<compile_context>
chip_gen: v7x
topology: tpu7x:2x2x1
jax: 0.10.0
libtpu: 0.0.40
codegen_flags: <defaults>
</compile_context>

<pallas_src>
import functools
import math

import jax
import jax.numpy as jnp
from jax.experimental import pallas as pl
from jax.experimental.pallas import tpu as pltpu


def _round_up(n, m):
    return ((n + m - 1) // m) * m


def actor_critic_kernel(x_ref, w1_ref, b1_ref, w2_ref, b2_ref, out_ref, *, action_dim):
    x = x_ref[...]

    # ---- fused layer 1: [TB, S] @ [S, 2H] -> [TB, 2H]; both branches' ReLU ----
    h = jnp.dot(x, w1_ref[...], preferred_element_type=jnp.float32) + b1_ref[...]
    h = jnp.maximum(h, 0.0)

    # ---- fused layer 2 (block-diagonal): [TB, 2H] @ [2H, P] -> [TB, P] ----
    # lanes [0, action_dim) = actor logits, lane action_dim = critic value,
    # lanes > action_dim are zero padding (weights and bias are zero there).
    fused = jnp.dot(h, w2_ref[...], preferred_element_type=jnp.float32) + b2_ref[...]

    lane = jax.lax.broadcasted_iota(jnp.int32, fused.shape, dimension=1)
    is_logit = lane < action_dim

    # Softmax over the logit lanes only (padded lanes masked to -inf -> exp = 0).
    logits = jnp.where(is_logit, fused, -jnp.inf)
    m = jnp.max(logits, axis=-1, keepdims=True)
    e = jnp.exp(logits - m)
    denom = jnp.sum(e, axis=-1, keepdims=True)
    probs = e * pl.reciprocal(denom, approx=False)   # EUP reciprocal, exact

    # Single lane-dense store: probs in logit lanes, raw value (and padding) elsewhere.
    out_ref[...] = jnp.where(is_logit, probs, fused).astype(out_ref.dtype)


def pack_params(params):
    """Pack the four PyTorch-style Linear layers into two fused weights."""
    wa1, ba1 = params["wa1"], params["ba1"]   # [S, H], [1, H]
    wa2, ba2 = params["wa2"], params["ba2"]   # [H, A], [1, A]
    wc1, bc1 = params["wc1"], params["bc1"]   # [S, H], [1, H]
    wc2, bc2 = params["wc2"], params["bc2"]   # [H, 1], [1, 1]

    hidden = wa1.shape[1]
    action_dim = wa2.shape[1]
    out_pad = _round_up(action_dim + 1, 128)  # lane-dense fused output width

    w1 = jnp.concatenate([wa1, wc1], axis=1)                  # [S, 2H]
    b1 = jnp.concatenate([ba1, bc1], axis=1)                  # [1, 2H]

    w2 = jnp.zeros((2 * hidden, out_pad), jnp.float32)
    w2 = w2.at[:hidden, :action_dim].set(wa2)
    w2 = w2.at[hidden:, action_dim:action_dim + 1].set(wc2)
    b2 = jnp.zeros((1, out_pad), jnp.float32)
    b2 = b2.at[:, :action_dim].set(ba2)
    b2 = b2.at[:, action_dim:action_dim + 1].set(bc2)

    return w1, b1, w2, b2, action_dim, out_pad


def actor_critic_forward(x, params, *, block_b=512, compute_dtype=jnp.float32):
    """Fused actor-critic forward.

    block_b: batch tile; sized so double-buffered x / out tiles stay well under
             v7x's 64 MiB VMEM (raise pltpu.CompilerParams(vmem_limit_bytes=...)
             only if you grow it far beyond this default).
    compute_dtype: pass jnp.bfloat16 on v6e/v7x for large-batch inference
             (accumulation stays f32 via preferred_element_type).
    """
    w1, b1, w2, b2, action_dim, out_pad = pack_params(params)
    B, state_dim = x.shape
    two_h = w1.shape[1]

    tb = min(block_b, _round_up(B, 8))
    b_pad = _round_up(B, tb)
    xp = x if b_pad == B else jnp.pad(x, ((0, b_pad - B), (0, 0)))

    if compute_dtype != jnp.float32:
        xp = xp.astype(compute_dtype)
        w1 = w1.astype(compute_dtype)
        w2 = w2.astype(compute_dtype)

    kernel = functools.partial(actor_critic_kernel, action_dim=action_dim)

    fused = pl.pallas_call(
        kernel,
        out_shape=jax.ShapeDtypeStruct((b_pad, out_pad), jnp.float32),
        grid_spec=pltpu.PrefetchScalarGridSpec(
            num_scalar_prefetch=0,
            grid=(b_pad // tb,),
            in_specs=[
                pl.BlockSpec((tb, state_dim), lambda i: (i, 0)),     # x: pipelined
                pl.BlockSpec((state_dim, two_h), lambda i: (0, 0)),  # w1: resident
                pl.BlockSpec((1, two_h), lambda i: (0, 0)),          # b1: resident
                pl.BlockSpec((two_h, out_pad), lambda i: (0, 0)),    # w2: resident
                pl.BlockSpec((1, out_pad), lambda i: (0, 0)),        # b2: resident
            ],
            out_specs=pl.BlockSpec((tb, out_pad), lambda i: (i, 0)),
        ),
        compiler_params=pltpu.CompilerParams(
            dimension_semantics=("parallel",),
        ),
    )(xp, w1, b1, w2, b2)

    policy = fused[:B, :action_dim]
    value = fused[:B, action_dim:action_dim + 1]
    return policy, value


def init_params(key, state_dim, action_dim, hidden=64):
    """Deterministic init mimicking PyTorch nn.Linear default (U[-1/sqrt(in), 1/sqrt(in)]).
    Weights are stored [in, out]; biases [1, out]."""
    keys = jax.random.split(key, 8)

    def linear(kw, kb, fan_in, fan_out):
        bound = 1.0 / math.sqrt(fan_in)
        w = jax.random.uniform(kw, (fan_in, fan_out), jnp.float32, -bound, bound)
        b = jax.random.uniform(kb, (1, fan_out), jnp.float32, -bound, bound)
        return w, b

    wa1, ba1 = linear(keys[0], keys[1], state_dim, hidden)
    wa2, ba2 = linear(keys[2], keys[3], hidden, action_dim)
    wc1, bc1 = linear(keys[4], keys[5], state_dim, hidden)
    wc2, bc2 = linear(keys[6], keys[7], hidden, 1)
    return dict(wa1=wa1, ba1=ba1, wa2=wa2, ba2=ba2,
                wc1=wc1, bc1=bc1, wc2=wc2, bc2=bc2)


def reference_forward(x, p):
    h_a = jnp.maximum(x @ p["wa1"] + p["ba1"], 0.0)
    policy = jax.nn.softmax(h_a @ p["wa2"] + p["ba2"], axis=-1)
    h_c = jnp.maximum(x @ p["wc1"] + p["bc1"], 0.0)
    value = h_c @ p["wc2"] + p["bc2"]
    return policy, value


if __name__ == "__main__":
    key = jax.random.PRNGKey(0)
    k_param, k_x = jax.random.split(key)

    batch = 8
    state_dim = 16
    action_dim = 6

    params = init_params(k_param, state_dim, action_dim)
    x = jax.random.normal(k_x, (batch, state_dim), dtype=jnp.float32)

    policy, value = actor_critic_forward(x, params)
    policy = jax.block_until_ready(policy)
    value = jax.block_until_ready(value)

    ref_policy, ref_value = reference_forward(x, params)
    assert policy.shape == (batch, action_dim)
    assert value.shape == (batch, 1)
    assert jnp.allclose(policy, ref_policy, atol=1e-5, rtol=1e-5)
    assert jnp.allclose(value, ref_value, atol=1e-5, rtol=1e-5)
    assert bool(jnp.all(jnp.isfinite(policy))) and bool(jnp.all(jnp.isfinite(value)))

    print("KERNEL_OK")
</pallas_src>

<mosaic_0001>
module attributes {stable_mosaic.version = 11 : i64} {
  func.func @actor_critic_kernel(%arg0: i32, %arg1: memref<8x16xf32, #tpu.memory_space<vmem>>, %arg2: memref<16x128xf32, #tpu.memory_space<vmem>>, %arg3: memref<1x128xf32, #tpu.memory_space<vmem>>, %arg4: memref<128x128xf32, #tpu.memory_space<vmem>>, %arg5: memref<1x128xf32, #tpu.memory_space<vmem>>, %arg6: memref<8x128xf32, #tpu.memory_space<vmem>>) attributes {dimension_semantics = [#tpu.dimension_semantics<parallel>], iteration_bounds = array<i64: 1>, scalar_prefetch = 0 : i64, scratch_operands = 0 : i64, tpu.core_type = #tpu.core_type<tc>, window_params = [{transform_indices = @transform_0, window_bounds = array<i64: 8, 16>}, {pipeline_mode = #tpu.pipeline_mode<synchronous>, transform_indices = @transform_1, window_bounds = array<i64: 16, 128>}, {pipeline_mode = #tpu.pipeline_mode<synchronous>, transform_indices = @transform_2, window_bounds = array<i64: 1, 128>}, {pipeline_mode = #tpu.pipeline_mode<synchronous>, transform_indices = @transform_3, window_bounds = array<i64: 128, 128>}, {pipeline_mode = #tpu.pipeline_mode<synchronous>, transform_indices = @transform_4, window_bounds = array<i64: 1, 128>}, {transform_indices = @transform_5, window_bounds = array<i64: 8, 128>}]} {
    %c0 = arith.constant 0 : index
    %c0_0 = arith.constant 0 : index
    %0 = vector.load %arg1[%c0, %c0_0] : memref<8x16xf32, #tpu.memory_space<vmem>>, vector<8x16xf32>
    %c0_1 = arith.constant 0 : index
    %c0_2 = arith.constant 0 : index
    %1 = vector.load %arg2[%c0_1, %c0_2] : memref<16x128xf32, #tpu.memory_space<vmem>>, vector<16x128xf32>
    %cst = arith.constant dense<0.000000e+00> : vector<8x128xf32>
    %2 = tpu.matmul %0, %1, %cst {dimension_numbers = #tpu.dot_dimension_numbers<[1], [0], [0], [1], [0, 0, 1, 1], [], []>} : vector<8x16xf32>, vector<16x128xf32>, vector<8x128xf32> -> vector<8x128xf32>
    %c0_3 = arith.constant 0 : index
    %c0_4 = arith.constant 0 : index
    %3 = vector.load %arg3[%c0_3, %c0_4] : memref<1x128xf32, #tpu.memory_space<vmem>>, vector<1x128xf32>
    %4 = vector.broadcast %3 : vector<1x128xf32> to vector<8x128xf32>
    %5 = arith.addf %2, %4 : vector<8x128xf32>
    %cst_5 = arith.constant 0.000000e+00 : f32
    %6 = vector.broadcast %cst_5 : f32 to vector<8x128xf32>
    %7 = arith.maximumf %5, %6 : vector<8x128xf32>
    %c0_6 = arith.constant 0 : index
    %c0_7 = arith.constant 0 : index
    %8 = vector.load %arg4[%c0_6, %c0_7] : memref<128x128xf32, #tpu.memory_space<vmem>>, vector<128x128xf32>
    %cst_8 = arith.constant dense<0.000000e+00> : vector<8x128xf32>
    %9 = tpu.matmul %7, %8, %cst_8 {dimension_numbers = #tpu.dot_dimension_numbers<[1], [0], [0], [1], [0, 0, 1, 1], [], []>} : vector<8x128xf32>, vector<128x128xf32>, vector<8x128xf32> -> vector<8x128xf32>
    %c0_9 = arith.constant 0 : index
    %c0_10 = arith.constant 0 : index
    %10 = vector.load %arg5[%c0_9, %c0_10] : memref<1x128xf32, #tpu.memory_space<vmem>>, vector<1x128xf32>
    %11 = vector.broadcast %10 : vector<1x128xf32> to vector<8x128xf32>
    %12 = arith.addf %9, %11 : vector<8x128xf32>
    %13 = tpu.iota {dimensions = array<i32: 1>} : vector<8x128xi32>
    %c6_i32 = arith.constant 6 : i32
    %14 = vector.broadcast %c6_i32 : i32 to vector<8x128xi32>
    %15 = arith.cmpi slt, %13, %14 : vector<8x128xi32>
    %cst_11 = arith.constant 0xFF800000 : f32
    %16 = vector.broadcast %cst_11 : f32 to vector<8x128xf32>
    %17 = arith.select %15, %12, %16 : vector<8x128xi1>, vector<8x128xf32>
    %cst_12 = arith.constant dense<0xFF800000> : vector<8xf32>
    %18 = vector.multi_reduction <maximumf>, %17, %cst_12 [1] : vector<8x128xf32> to vector<8xf32>
    %19 = vector.shape_cast %18 : vector<8xf32> to vector<8x1xf32>
    %20 = vector.broadcast %19 : vector<8x1xf32> to vector<8x128xf32>
    %21 = arith.subf %17, %20 : vector<8x128xf32>
    %22 = math.exp %21 : vector<8x128xf32>
    %cst_13 = arith.constant dense<0.000000e+00> : vector<8xf32>
    %23 = vector.multi_reduction <add>, %22, %cst_13 [1] : vector<8x128xf32> to vector<8xf32>
    %24 = vector.shape_cast %23 : vector<8xf32> to vector<8x1xf32>
    %25 = tpu.reciprocal %24 : vector<8x1xf32> -> vector<8x1xf32>
    %26 = vector.broadcast %25 : vector<8x1xf32> to vector<8x128xf32>
    %27 = arith.mulf %22, %26 : vector<8x128xf32>
    %28 = arith.select %15, %27, %12 : vector<8x128xi1>, vector<8x128xf32>
    %c0_14 = arith.constant 0 : index
    %c0_15 = arith.constant 0 : index
    %29 = vector.load %arg6[%c0_14, %c0_15] : memref<8x128xf32, #tpu.memory_space<vmem>>, vector<8x128xf32>
    tpu.vector_store %arg6[%c0_14, %c0_15], %28 {strides = array<i32>} : memref<8x128xf32, #tpu.memory_space<vmem>>, vector<8x128xf32>,
    return
  }
  func.func @transform_0(%arg0: i32) -> (i32, i32) {
    %c0_i32 = arith.constant 0 : i32
    %c0_i32_0 = arith.constant 0 : i32
    return %arg0, %c0_i32 : i32, i32
  }
  func.func @transform_1(%arg0: i32) -> (i32, i32) {
    %c0_i32 = arith.constant 0 : i32
    %c0_i32_0 = arith.constant 0 : i32
    %c0_i32_1 = arith.constant 0 : i32
    return %c0_i32, %c0_i32_0 : i32, i32
  }
  func.func @transform_2(%arg0: i32) -> (i32, i32) {
    %c0_i32 = arith.constant 0 : i32
    %c0_i32_0 = arith.constant 0 : i32
    %c0_i32_1 = arith.constant 0 : i32
    return %c0_i32, %c0_i32_0 : i32, i32
  }
  func.func @transform_3(%arg0: i32) -> (i32, i32) {
    %c0_i32 = arith.constant 0 : i32
    %c0_i32_0 = arith.constant 0 : i32
    %c0_i32_1 = arith.constant 0 : i32
    return %c0_i32, %c0_i32_0 : i32, i32
  }
  func.func @transform_4(%arg0: i32) -> (i32, i32) {
    %c0_i32 = arith.constant 0 : i32
    %c0_i32_0 = arith.constant 0 : i32
    %c0_i32_1 = arith.constant 0 : i32
    return %c0_i32, %c0_i32_0 : i32, i32
  }
  func.func @transform_5(%arg0: i32) -> (i32, i32) {
    %c0_i32 = arith.constant 0 : i32
    %c0_i32_0 = arith.constant 0 : i32
    return %arg0, %c0_i32 : i32, i32
  }
}

</mosaic_0001>

<llo_original>
// kernel: tpu_custom_call.1
$region0: #{tpu_custom_call.1}
  #allocation0 [shape = 'u32[]', space=smem, size = 0x4, offset = 0x4, fixed_abs, tag = 'smem constant byte address 0x4 - core index']
  #allocation1 [shape = 'u32[144,128]{1,0:T(1,128)}', space=vmem, size = 0x12000, scoped, tag = 'internal scratch']
  %s0 = inlined_call_operand.hbm [shape: f32[8,16], index: 0, kind: input, shape index: {}]
  %s1 = inlined_call_operand.hbm [shape: f32[16,128], index: 1, kind: input, shape index: {}]
  %s2 = inlined_call_operand.vmem [shape: f32[1,128], index: 2, kind: input, shape index: {}]
  %s3 = inlined_call_operand.hbm [shape: f32[128,128], index: 3, kind: input, shape index: {}]
  %s4 = inlined_call_operand.vmem [shape: f32[1,128], index: 4, kind: input, shape index: {}]
  %s5 = inlined_call_operand.hbm [shape: f32[8,128], index: 5, kind: output, shape index: {}]
  %s6 = sld [smem:[#allocation0]]
  $region42: #{tpu_custom_call.1} parent=0
    _
  %s8 = ssub.s32 1, %s6
  %s9 = scalar_select 0, %s8, %s6
  $region1: #{tpu_custom_call.1} parent=0
    #allocation2 [shape = 'u8[4096]{0}', space=vmem, size = 0x1000, scoped, tag = 'input window, operand 0, single buffered']
    #allocation3 [shape = 's32[1]{0}', space=sflag, size = 0x4, scoped, tag = 'scoped memory for tpu_custom_call.1']
    #allocation4 [shape = 's32[1]{0}', space=sflag, size = 0x4, scoped, tag = 'scoped memory for tpu_custom_call.1']
    #allocation5 [shape = 'u8[8192]{0}', space=vmem, size = 0x2000, scoped, tag = 'input window, operand 1, single buffered']
    #allocation6 [shape = 's32[1]{0}', space=sflag, size = 0x4, scoped, tag = 'scoped memory for tpu_custom_call.1']
    #allocation7 [shape = 'u8[65536]{0}', space=vmem, size = 0x10000, scoped, tag = 'input window, operand 3, single buffered']
    #allocation8 [shape = 'u8[4096]{0}', space=vmem, size = 0x1000, scoped, tag = 'output window, operand 0, single buffered']
    %10 = vsyncpa [#allocation3], 0
    %11 = vsyncpa [#allocation6], 0
    %12 = vsyncpa [#allocation4], 0
    // Predicated region
    $region2: #{tpu_custom_call.1} parent=1 // pred_check
      _
    $region3: #{tpu_custom_call.1} parent=1 // pred_check_branch
      %14 = sbr.rel (0) target = $region5
    $region4: #{tpu_custom_call.1} parent=1 // pred_region
      %s16 = ssub.s32 128, 128
      %17 = vsyncadd [#allocation3], %s16
      %s19 = sshll.u32 [#allocation2], 4
      %s20 = int_to_ptr.vmem [resolvable:$true] %s19
      %22 = dma.hbm_to_vmem [thread:$0]  %s0, 128, %s20, [#allocation3]
    $region5: #{tpu_custom_call.1} parent=1 // pred_fallthru
      _
    // Predicated region
    $region6: #{tpu_custom_call.1} parent=1 // pred_check
      _
    $region7: #{tpu_custom_call.1} parent=1 // pred_check_branch
      %24 = sbr.rel (0) target = $region9
    $region8: #{tpu_custom_call.1} parent=1 // pred_region
      %s26 = ssub.s32 256, 256
      %27 = vsyncadd [#allocation6], %s26
      %s28 = sshll.u32 [#allocation5], 4
      %s29 = int_to_ptr.vmem [resolvable:$true] %s28
      %34 = dma.hbm_to_vmem [thread:$0]  %s1, 256, %s29, [#allocation6], 128, 128, 8
    $region9: #{tpu_custom_call.1} parent=1 // pred_fallthru
      _
    // Predicated region
    $region10: #{tpu_custom_call.1} parent=1 // pred_check
      _
    $region11: #{tpu_custom_call.1} parent=1 // pred_check_branch
      %36 = sbr.rel (0) target = $region13
    $region12: #{tpu_custom_call.1} parent=1 // pred_region
      _
    $region13: #{tpu_custom_call.1} parent=1 // pred_fallthru
      _
    // Predicated region
    $region14: #{tpu_custom_call.1} parent=1 // pred_check
      _
    $region15: #{tpu_custom_call.1} parent=1 // pred_check_branch
      %38 = sbr.rel (0) target = $region17
    $region16: #{tpu_custom_call.1} parent=1 // pred_region
      %s40 = ssub.s32 2048, 2048
      %41 = vsyncadd [#allocation6], %s40
      %s42 = sshll.u32 [#allocation7], 4
      %s43 = int_to_ptr.vmem [resolvable:$true] %s42
      %48 = dma.hbm_to_vmem [thread:$0]  %s3, 2048, %s43, [#allocation6], 128, 128, 8
    $region17: #{tpu_custom_call.1} parent=1 // pred_fallthru
      _
    // Predicated region
    $region18: #{tpu_custom_call.1} parent=1 // pred_check
      _
    $region19: #{tpu_custom_call.1} parent=1 // pred_check_branch
      %50 = sbr.rel (0) target = $region21
    $region20: #{tpu_custom_call.1} parent=1 // pred_region
      _
    $region21: #{tpu_custom_call.1} parent=1 // pred_fallthru
      _
    // Predicated region
    $region22: #{tpu_custom_call.1} parent=1 // pred_check
      _
    $region23: #{tpu_custom_call.1} parent=1 // pred_check_branch
      %52 = sbr.rel (0) target = $region25
    $region24: #{tpu_custom_call.1} parent=1 // pred_region
      %53 = dma.done [#allocation3], 128
    $region25: #{tpu_custom_call.1} parent=1 // pred_fallthru
      _
    // Predicated region
    $region26: #{tpu_custom_call.1} parent=1 // pred_check
      _
    $region27: #{tpu_custom_call.1} parent=1 // pred_check_branch
      %55 = sbr.rel (0) target = $region29
    $region28: #{tpu_custom_call.1} parent=1 // pred_region
      %56 = dma.done [#allocation6], 256
    $region29: #{tpu_custom_call.1} parent=1 // pred_fallthru
      _
    // Predicated region
    $region30: #{tpu_custom_call.1} parent=1 // pred_check
      _
    $region31: #{tpu_custom_call.1} parent=1 // pred_check_branch
      %58 = sbr.rel (0) target = $region33
    $region32: #{tpu_custom_call.1} parent=1 // pred_region
      %59 = dma.done [#allocation6], 2048
    $region33: #{tpu_custom_call.1} parent=1 // pred_fallthru
      _
    %v60 = vld [vmem:[#allocation2] sm:$0xff]
    %v61 = vld [vmem:[#allocation5] sm:$0xff]
    %v62 = vld [vmem:[#allocation5 + $0x8] sm:$0xff]
    %v63 = vld [vmem:[%s2] sm:$0x1]
    %v65 = vlaneseq
    %v66 = vshrl.u32 %v65, 7
    %v67 = vsub.s32 0, %v66
    %v68 = vrot.slane %v63, %v67
    %vm70 = vcmask 130048
    %v72 = vsel %vm70, %v60, 0
    %74 = vmatprep.subr.mxu0 0.0
    %75 = vmatpush1.msra.mxu0 %v61
    %76 = vmatprep.subr.mxu0 0.0
    %77 = vmatpush1.msra.mxu0 %v62
    %78 = vmatprep.subr.mxu0 0.0
    %79 = vmatpush1.msra.mxu0 0.0
    %80 = vmatprep.subr.mxu0 0.0
    %81 = vmatpush1.msra.mxu0 0.0
    %82 = vmatprep.subr.mxu0 0.0
    %83 = vmatpush1.msra.mxu0 0.0
    %84 = vmatprep.subr.mxu0 0.0
    %85 = vmatpush1.msra.mxu0 0.0
    %86 = vmatprep.subr.mxu0 0.0
    %87 = vmatpush1.msra.mxu0 0.0
    %88 = vmatprep.subr.mxu0 0.0
    %89 = vmatpush1.msra.mxu0 0.0
    %90 = vmatprep.subr.mxu0 0.0
    %91 = vmatpush1.msra.mxu0 0.0
    %92 = vmatprep.subr.mxu0 0.0
    %93 = vmatpush1.msra.mxu0 0.0
    %94 = vmatprep.subr.mxu0 0.0
    %95 = vmatpush1.msra.mxu0 0.0
    %96 = vmatprep.subr.mxu0 0.0
    %97 = vmatpush1.msra.mxu0 0.0
    %98 = vmatprep.subr.mxu0 0.0
    %99 = vmatpush1.msra.mxu0 0.0
    %100 = vmatprep.subr.mxu0 0.0
    %101 = vmatpush1.msra.mxu0 0.0
    %102 = vmatprep.subr.mxu0 0.0
    %103 = vmatpush1.msra.mxu0 0.0
    %104 = vmatprep.subr.mxu0 0.0
    %105 = vmatpush1.msra.mxu0 0.0
    %106 = vmatprep.subr.mxu0 0.0
    %107 = vmatpush1.msra.mxu0 0.0
    %108 = vmatprep.subr.mxu0 0.0
    %109 = vmatpush1.msra.mxu0 0.0
    %110 = vmatprep.subr.mxu0 0.0
    %111 = vmatpush1.msra.mxu0 0.0
    %112 = vmatprep.subr.mxu0 0.0
    %113 = vmatpush1.msra.mxu0 0.0
    %114 = vmatprep.subr.mxu0 0.0
    %115 = vmatpush1.msra.mxu0 0.0
    %116 = vmatprep.subr.mxu0 0.0
    %117 = vmatpush1.msra.mxu0 0.0
    %118 = vmatprep.subr.mxu0 0.0
    %119 = vmatpush1.msra.mxu0 0.0
    %120 = vmatprep.subr.mxu0 0.0
    %121 = vmatpush1.msra.mxu0 0.0
    %122 = vmatprep.subr.mxu0 0.0
    %123 = vmatpush1.msra.mxu0 0.0
    %124 = vmatprep.subr.mxu0 0.0
    %125 = vmatpush1.msra.mxu0 0.0
    %126 = vmatprep.subr.mxu0 0.0
    %127 = vmatpush1.msra.mxu0 0.0
    %128 = vmatprep.subr.mxu0 0.0
    %129 = vmatpush1.msra.mxu0 0.0
    %130 = vmatprep.subr.mxu0 0.0
    %131 = vmatpush1.msra.mxu0 0.0
    %132 = vmatprep.subr.mxu0 0.0
    %133 = vmatpush1.msra.mxu0 0.0
    %134 = vmatprep.subr.mxu0 0.0
    %135 = vmatpush1.msra.mxu0 0.0
    %136 = vmatprep.subr.mxu0 0.0
    %137 = vmatpush1.msra.mxu0 0.0
    %138 = vmatprep.mubr.f32.mxu0 0.0
    %139 = vmatmul.mubr.f32.gmra.mrb[0].mxu0 %v72
    %v140 = vpop.f32.mrb[0].mxu0
    %v141 = vadd.f32 %v68, %v140
    %v142 = vpop.f32.mrb[0].mxu0
    %143 = vdwg.mxu0
    %v144 = vmax.f32 %v141, 0.0
    %v145 = vld [vmem:[#allocation7] sm:$0xff]
    %v146 = vld [vmem:[#allocation7 + $0x8] sm:$0xff]
    %v147 = vld [vmem:[#allocation7 + $0x10] sm:$0xff]
    %v148 = vld [vmem:[#allocation7 + $0x18] sm:$0xff]
    %v149 = vld [vmem:[#allocation7 + $0x20] sm:$0xff]
    %v150 = vld [vmem:[#allocation7 + $0x28] sm:$0xff]
    %v151 = vld [vmem:[#allocation7 + $0x30] sm:$0xff]
    %v152 = vld [vmem:[#allocation7 + $0x38] sm:$0xff]
    %v153 = vld [vmem:[#allocation7 + $0x40] sm:$0xff]
    %v154 = vld [vmem:[#allocation7 + $0x48] sm:$0xff]
    %v155 = vld [vmem:[#allocation7 + $0x50] sm:$0xff]
    %v156 = vld [vmem:[#allocation7 + $0x58] sm:$0xff]
    %v157 = vld [vmem:[#allocation7 + $0x60] sm:$0xff]
    %v158 = vld [vmem:[#allocation7 + $0x68] sm:$0xff]
    %v159 = vld [vmem:[#allocation7 + $0x70] sm:$0xff]
    %v160 = vld [vmem:[#allocation7 + $0x78] sm:$0xff]
    %v161 = vld [vmem:[%s4] sm:$0x1]
    %v163 = vlaneseq
    %v164 = vshrl.u32 %v163, 7
    %v165 = vsub.s32 0, %v164
    %v166 = vrot.slane %v161, %v165
    %168 = vmatprep.subr.mxu0 0.0
    %169 = vmatpush1.msra.mxu0 %v145
    %170 = vmatprep.subr.mxu0 0.0
    %171 = vmatpush1.msra.mxu0 %v146
    %172 = vmatprep.subr.mxu0 0.0
    %173 = vmatpush1.msra.mxu0 %v147
    %174 = vmatprep.subr.mxu0 0.0
    %175 = vmatpush1.msra.mxu0 %v148
    %176 = vmatprep.subr.mxu0 0.0
    %177 = vmatpush1.msra.mxu0 %v149
    %178 = vmatprep.subr.mxu0 0.0
    %179 = vmatpush1.msra.mxu0 %v150
    %180 = vmatprep.subr.mxu0 0.0
    %181 = vmatpush1.msra.mxu0 %v151
    %182 = vmatprep.subr.mxu0 0.0
    %183 = vmatpush1.msra.mxu0 %v152
    %184 = vmatprep.subr.mxu0 0.0
    %185 = vmatpush1.msra.mxu0 %v153
    %186 = vmatprep.subr.mxu0 0.0
    %187 = vmatpush1.msra.mxu0 %v154
    %188 = vmatprep.subr.mxu0 0.0
    %189 = vmatpush1.msra.mxu0 %v155
    %190 = vmatprep.subr.mxu0 0.0
    %191 = vmatpush1.msra.mxu0 %v156
    %192 = vmatprep.subr.mxu0 0.0
    %193 = vmatpush1.msra.mxu0 %v157
    %194 = vmatprep.subr.mxu0 0.0
    %195 = vmatpush1.msra.mxu0 %v158
    %196 = vmatprep.subr.mxu0 0.0
    %197 = vmatpush1.msra.mxu0 %v159
    %198 = vmatprep.subr.mxu0 0.0
    %199 = vmatpush1.msra.mxu0 %v160
    %200 = vmatprep.subr.mxu0 0.0
    %201 = vmatpush1.msra.mxu0 0.0
    %202 = vmatprep.subr.mxu0 0.0
    %203 = vmatpush1.msra.mxu0 0.0
    %204 = vmatprep.subr.mxu0 0.0
    %205 = vmatpush1.msra.mxu0 0.0
    %206 = vmatprep.subr.mxu0 0.0
    %207 = vmatpush1.msra.mxu0 0.0
    %208 = vmatprep.subr.mxu0 0.0
    %209 = vmatpush1.msra.mxu0 0.0
    %210 = vmatprep.subr.mxu0 0.0
    %211 = vmatpush1.msra.mxu0 0.0
    %212 = vmatprep.subr.mxu0 0.0
    %213 = vmatpush1.msra.mxu0 0.0
    %214 = vmatprep.subr.mxu0 0.0
    %215 = vmatpush1.msra.mxu0 0.0
    %216 = vmatprep.subr.mxu0 0.0
    %217 = vmatpush1.msra.mxu0 0.0
    %218 = vmatprep.subr.mxu0 0.0
    %219 = vmatpush1.msra.mxu0 0.0
    %220 = vmatprep.subr.mxu0 0.0
    %221 = vmatpush1.msra.mxu0 0.0
    %222 = vmatprep.subr.mxu0 0.0
    %223 = vmatpush1.msra.mxu0 0.0
    %224 = vmatprep.subr.mxu0 0.0
    %225 = vmatpush1.msra.mxu0 0.0
    %226 = vmatprep.subr.mxu0 0.0
    %227 = vmatpush1.msra.mxu0 0.0
    %228 = vmatprep.subr.mxu0 0.0
    %229 = vmatpush1.msra.mxu0 0.0
    %230 = vmatprep.subr.mxu0 0.0
    %231 = vmatpush1.msra.mxu0 0.0
    %232 = vmatprep.mubr.f32.mxu0 0.0
    %233 = vmatmul.mubr.f32.gmra.mrb[0].mxu0 %v144
    %v234 = vpop.f32.mrb[0].mxu0
    %v235 = vadd.f32 %v166, %v234
    %v236 = vpop.f32.mrb[0].mxu0
    %237 = vdwg.mxu0
    %v238 = vlaneseq
    %v239 = vand.u32 %v238, 127
    %vm240 = vcmp.lt.s32.totalorder %v239, 6
    %v241 = vsel %vm240, %v235, -inf
    %242 = vmax.xlane.f32.xlu0 %v241
    %v243 = vpop.xlane.xlu0 %242
    %v244 = vsub.f32 %v241, %v243
    %v245 = vmul.f32 %v244, 1.442695
    %v246 = vpow.pop %v245
    %247 = vadd.xlane.f32.xlu0 %v246
    %v248 = vpop.xlane.xlu0 %247
    %v249 = vrcp.pop %v248
    %v250 = vmul.f32 %v246, %v249
    %v251 = vsel %vm240, %v250, %v235
    %252 = vst [vmem:[#allocation8] sm:$0xff] %v251
    // Predicated region
    $region34: #{tpu_custom_call.1} parent=1 // pred_check
      _
    $region35: #{tpu_custom_call.1} parent=1 // pred_check_branch
      %254 = sbr.rel (0) target = $region37
    $region36: #{tpu_custom_call.1} parent=1 // pred_region
      %s256 = ssub.s32 128, 128
      %257 = vsyncadd [#allocation4], %s256
      %s259 = sshll.u32 [#allocation8], 4
      %s260 = int_to_ptr.vmem [resolvable:$true] %s259
      %262 = dma.vmem_to_hbm [thread:$0]  %s260, 128, %s5, [#allocation4]
    $region37: #{tpu_custom_call.1} parent=1 // pred_fallthru
      _
    // Predicated region
    $region38: #{tpu_custom_call.1} parent=1 // pred_check
      _
    $region39: #{tpu_custom_call.1} parent=1 // pred_check_branch
      %264 = sbr.rel (0) target = $region41
    $region40: #{tpu_custom_call.1} parent=1 // pred_region
      %265 = dma.done [#allocation4], 128
    $region41: #{tpu_custom_call.1} parent=1 // pred_fallthru
      _
    %266 = vsyncpa [#allocation3], 1
    %267 = vsyncpa [#allocation6], 1
    %268 = vsyncpa [#allocation4], 1

</llo_original>
